<compile_context>
chip_gen: v7x
topology: tpu7x:2x2x1
jax: 0.10.0
libtpu: 0.0.40
codegen_flags: <defaults>
</compile_context>

<pallas_src>
import functools
import math

import jax
import jax.numpy as jnp
from jax import lax
from jax.experimental import pallas as pl
from jax.experimental.pallas import tpu as pltpu


def _round_up(v, mult):
    return (v + mult - 1) // mult * mult


def _wnorm_kernel(w_ref, wn_ref):
    """L2-normalize the columns of one (F, tn) tile of w (F.normalize dim=0)."""
    w = w_ref[...].astype(jnp.float32)
    # rsqrt + multiply (EUP) instead of sqrt + divide (VALU); the max() clamp
    # reproduces F.normalize's eps=1e-12 behaviour (eps^2 = 1e-24).
    inv = lax.rsqrt(jnp.maximum(jnp.sum(w * w, axis=0, keepdims=True), 1e-24))
    wn_ref[...] = (w * inv).astype(wn_ref.dtype)


def _arcsoftmax_kernel(x_ref, wn_ref, out_ref, *, s, m, c_valid, c_padded):
    x = x_ref[...].astype(jnp.float32)          # (tb, F)
    w_n = wn_ref[...].astype(jnp.float32)       # (F, Cp), unit-norm columns

    # Row-normalize x (rsqrt + multiply).
    x_inv = lax.rsqrt(jnp.maximum(jnp.sum(x * x, axis=1, keepdims=True), 1e-24))
    x_n = x * x_inv

    # dot = x_n @ w_n ; cosa = dot / 10, but the /10 cancels the *10 inside
    # exp(s*cosa*10), so the exponent is simply s*dot.
    dot = jnp.dot(x_n, w_n, preferred_element_type=jnp.float32)   # (tb, Cp)

    z1 = dot if s == 1.0 else dot * s
    e_cos = jnp.exp(z1)                                           # exp(s*cosa*10)

    # cos(acos(c)+m) = c*cos(m) - sqrt(1-c^2)*sin(m)  (exact; |cosa| <= 0.1).
    # Exponent: s*10*cos(a+m) = (s*cos m)*dot - (10*s*sin m)*sqrt(1-(dot/10)^2)
    t = dot * 0.1
    sina = jnp.sqrt(jnp.maximum(1.0 - t * t, 0.0))
    z2 = (s * math.cos(m)) * dot - (10.0 * s * math.sin(m)) * sina
    e_cos_am = jnp.exp(z2)                                        # exp(s*cos(a+m)*10)

    # Row-sum of e_cos over valid classes only (exclude zero-padded columns,
    # which would otherwise each contribute exp(0)=1).
    if c_valid < c_padded:
        lane = lax.broadcasted_iota(jnp.int32, e_cos.shape, 1)
        e_cos_for_sum = jnp.where(lane < c_valid, e_cos, 0.0)
    else:
        e_cos_for_sum = e_cos
    row_sum = jnp.sum(e_cos_for_sum, axis=1, keepdims=True)       # (tb, 1)

    denom = row_sum - e_cos + e_cos_am
    # Approx reciprocal on the EUP + one Newton step (restores accuracy well
    # below the 1e-5 tolerance; out values are O(1/C) so abs error is tiny).
    inv = pl.reciprocal(denom, approx=True)
    inv = inv * (2.0 - denom * inv)
    out_ref[...] = (e_cos_am * inv).astype(out_ref.dtype)


def arcsoftmax(x, w, s=1.0, m=0.2, *, tb=None, tn_w=512):
    """ArcFace-style margin softmax matching the PyTorch module's forward."""
    B, F = x.shape
    F2, C = w.shape
    assert F == F2
    s = float(s)
    m = float(m)

    # Lane-dense class axis (multiple of 128); batch padded to the batch tile.
    Cp = _round_up(C, 128)
    if tb is None:
        tb = min(128, _round_up(B, 8))
    Bp = _round_up(B, tb)

    xp = x if Bp == B else jnp.pad(x, ((0, Bp - B), (0, 0)))
    wp = w if Cp == C else jnp.pad(w, ((0, 0), (0, Cp - C)))

    # Pass 1: normalize w columns once (hoisted out of the batch loop).
    tn = min(tn_w, Cp)
    w_n = pl.pallas_call(
        _wnorm_kernel,
        out_shape=jax.ShapeDtypeStruct((F, Cp), jnp.float32),
        grid=(Cp // tn,),
        in_specs=[pl.BlockSpec((F, tn), lambda j: (0, j))],
        out_specs=pl.BlockSpec((F, tn), lambda j: (0, j)),
        compiler_params=pltpu.CompilerParams(
            dimension_semantics=("parallel",)),
    )(wp)

    # Pass 2: batch-tiled arc-softmax; batch tiles are independent, so the
    # axis is "parallel" (sharded across TensorCores on megacore chips).
    kernel = functools.partial(
        _arcsoftmax_kernel, s=s, m=m, c_valid=C, c_padded=Cp)
    out_p = pl.pallas_call(
        kernel,
        out_shape=jax.ShapeDtypeStruct((Bp, Cp), jnp.float32),
        grid=(Bp // tb,),
        in_specs=[
            pl.BlockSpec((tb, F), lambda i: (i, 0)),
            pl.BlockSpec((F, Cp), lambda i: (0, 0)),
        ],
        out_specs=pl.BlockSpec((tb, Cp), lambda i: (i, 0)),
        compiler_params=pltpu.CompilerParams(
            dimension_semantics=("parallel",)),
    )(xp, w_n)

    return out_p[:B, :C]


if __name__ == "__main__":
    # Small shapes consistent with the module: batch=8, feature_num=32,
    # cls_num=16.
    B, FEATURE_NUM, CLS_NUM = 8, 32, 16

    key = jax.random.PRNGKey(0)
    kx, kw = jax.random.split(key)
    x = jax.random.normal(kx, (B, FEATURE_NUM), dtype=jnp.float32)
    # nn.Parameter(torch.randn((feature_num, cls_num))) -> deterministic init.
    w = jax.random.normal(kw, (FEATURE_NUM, CLS_NUM), dtype=jnp.float32)

    out = arcsoftmax(x, w, s=1.0, m=0.2)
    out = jax.block_until_ready(out)

    # Pure-JAX reference of the original PyTorch math (uses arccos/cos).
    x_n = x / jnp.maximum(jnp.linalg.norm(x, axis=1, keepdims=True), 1e-12)
    w_n = w / jnp.maximum(jnp.linalg.norm(w, axis=0, keepdims=True), 1e-12)
    cosa = (x_n @ w_n) / 10.0
    a = jnp.arccos(cosa)
    e_cos = jnp.exp(1.0 * cosa * 10.0)
    e_cos_am = jnp.exp(1.0 * jnp.cos(a + 0.2) * 10.0)
    ref = e_cos_am / (jnp.sum(e_cos, axis=1, keepdims=True) - e_cos + e_cos_am)

    assert out.shape == (B, CLS_NUM)
    assert jnp.allclose(out, ref, atol=1e-5, rtol=1e-5), float(
        jnp.max(jnp.abs(out - ref)))

    print("KERNEL_OK")
</pallas_src>

<mosaic_0001>
module attributes {stable_mosaic.version = 11 : i64} {
  func.func @_wnorm_kernel(%arg0: i32, %arg1: memref<32x128xf32, #tpu.memory_space<vmem>>, %arg2: memref<32x128xf32, #tpu.memory_space<vmem>>) attributes {dimension_semantics = [#tpu.dimension_semantics<parallel>], iteration_bounds = array<i64: 1>, scalar_prefetch = 0 : i64, scratch_operands = 0 : i64, tpu.core_type = #tpu.core_type<tc>, window_params = [{transform_indices = @transform_0, window_bounds = array<i64: 32, 128>}, {transform_indices = @transform_1, window_bounds = array<i64: 32, 128>}]} {
    %c0 = arith.constant 0 : index
    %c0_0 = arith.constant 0 : index
    %0 = vector.load %arg1[%c0, %c0_0] : memref<32x128xf32, #tpu.memory_space<vmem>>, vector<32x128xf32>
    %1 = arith.mulf %0, %0 : vector<32x128xf32>
    %cst = arith.constant dense<0.000000e+00> : vector<128xf32>
    %2 = vector.multi_reduction <add>, %1, %cst [0] : vector<32x128xf32> to vector<128xf32>
    %3 = vector.shape_cast %2 : vector<128xf32> to vector<1x128xf32>
    %cst_1 = arith.constant 1.000000e-24 : f32
    %4 = vector.broadcast %cst_1 : f32 to vector<1x128xf32>
    %5 = arith.maximumf %3, %4 : vector<1x128xf32>
    %6 = math.rsqrt %5 : vector<1x128xf32>
    %7 = vector.broadcast %6 : vector<1x128xf32> to vector<32x128xf32>
    %8 = arith.mulf %0, %7 : vector<32x128xf32>
    %c0_2 = arith.constant 0 : index
    %c0_3 = arith.constant 0 : index
    %9 = vector.load %arg2[%c0_2, %c0_3] : memref<32x128xf32, #tpu.memory_space<vmem>>, vector<32x128xf32>
    tpu.vector_store %arg2[%c0_2, %c0_3], %8 {strides = array<i32>} : memref<32x128xf32, #tpu.memory_space<vmem>>, vector<32x128xf32>,
    return
  }
  func.func @transform_0(%arg0: i32) -> (i32, i32) {
    %c0_i32 = arith.constant 0 : i32
    %c0_i32_0 = arith.constant 0 : i32
    return %c0_i32, %arg0 : i32, i32
  }
  func.func @transform_1(%arg0: i32) -> (i32, i32) {
    %c0_i32 = arith.constant 0 : i32
    %c0_i32_0 = arith.constant 0 : i32
    return %c0_i32, %arg0 : i32, i32
  }
}

</mosaic_0001>

<llo_original>
// kernel: tpu_custom_call.1
$region0: #{tpu_custom_call.1}
  #allocation0 [shape = 'u32[]', space=smem, size = 0x4, offset = 0x4, fixed_abs, tag = 'smem constant byte address 0x4 - core index']
  #allocation1 [shape = 'u32[144,128]{1,0:T(1,128)}', space=vmem, size = 0x12000, scoped, tag = 'internal scratch']
  %s0 = inlined_call_operand.hbm [shape: f32[32,128], index: 0, kind: input, shape index: {}]
  %s1 = inlined_call_operand.hbm [shape: f32[32,128], index: 1, kind: output, shape index: {}]
  %s2 = sld [smem:[#allocation0]]
  $region18: #{tpu_custom_call.1} parent=0
    _
  %s4 = ssub.s32 1, %s2
  %s5 = scalar_select 0, %s4, %s2
  $region1: #{tpu_custom_call.1} parent=0
    #allocation2 [shape = 'u8[16384]{0}', space=vmem, size = 0x4000, scoped, tag = 'input window, operand 0, single buffered']
    #allocation3 [shape = 's32[1]{0}', space=sflag, size = 0x4, scoped, tag = 'scoped memory for tpu_custom_call.1']
    #allocation4 [shape = 's32[1]{0}', space=sflag, size = 0x4, scoped, tag = 'scoped memory for tpu_custom_call.1']
    #allocation5 [shape = 'u8[16384]{0}', space=vmem, size = 0x4000, scoped, tag = 'output window, operand 0, single buffered']
    %6 = vsyncpa [#allocation3], 0
    %7 = vsyncpa [#allocation4], 0
    // Predicated region
    $region2: #{tpu_custom_call.1} parent=1 // pred_check
      _
    $region3: #{tpu_custom_call.1} parent=1 // pred_check_branch
      %9 = sbr.rel (0) target = $region5
    $region4: #{tpu_custom_call.1} parent=1 // pred_region
      %s11 = ssub.s32 512, 512
      %12 = vsyncadd [#allocation3], %s11
      %s13 = sshll.u32 [#allocation2], 4
      %s14 = int_to_ptr.vmem [resolvable:$true] %s13
      %19 = dma.hbm_to_vmem [thread:$0]  %s0, 512, %s14, [#allocation3], 128, 128, 8
    $region5: #{tpu_custom_call.1} parent=1 // pred_fallthru
      _
    // Predicated region
    $region6: #{tpu_custom_call.1} parent=1 // pred_check
      _
    $region7: #{tpu_custom_call.1} parent=1 // pred_check_branch
      %21 = sbr.rel (0) target = $region9
    $region8: #{tpu_custom_call.1} parent=1 // pred_region
      %22 = dma.done [#allocation3], 512
    $region9: #{tpu_custom_call.1} parent=1 // pred_fallthru
      _
    %v23 = vld [vmem:[#allocation2] sm:$0xff]
    %v24 = vld [vmem:[#allocation2 + $0x8] sm:$0xff]
    %v25 = vld [vmem:[#allocation2 + $0x10] sm:$0xff]
    %v26 = vld [vmem:[#allocation2 + $0x18] sm:$0xff]
    %v27 = vmul.f32 %v23, %v23
    %v28 = vmul.f32 %v24, %v24
    %v29 = vmul.f32 %v25, %v25
    %v30 = vmul.f32 %v26, %v26
    %v31 = vadd.f32 %v27, %v28
    %v32 = vadd.f32 %v31, %v29
    %v33 = vadd.f32 %v32, %v30
    %v34 = vrot.slane %v33, 4
    %v35 = vadd.f32 %v33, %v34
    %v36 = vrot.slane %v35, 2
    %v37 = vadd.f32 %v35, %v36
    %v38 = vrot.slane %v37, 1
    %v39 = vadd.f32 %v37, %v38
    %v40 = vmax.f32 %v39, 1e-24
    %v41 = vrsqrt.pop %v40
    %v42 = vmul.f32 %v23, %v41
    %v43 = vmul.f32 %v24, %v41
    %v44 = vmul.f32 %v25, %v41
    %v45 = vmul.f32 %v26, %v41
    %46 = vst [vmem:[#allocation5] sm:$0xff] %v42
    %47 = vst [vmem:[#allocation5 + $0x8] sm:$0xff] %v43
    %48 = vst [vmem:[#allocation5 + $0x10] sm:$0xff] %v44
    %49 = vst [vmem:[#allocation5 + $0x18] sm:$0xff] %v45
    // Predicated region
    $region10: #{tpu_custom_call.1} parent=1 // pred_check
      _
    $region11: #{tpu_custom_call.1} parent=1 // pred_check_branch
      %51 = sbr.rel (0) target = $region13
    $region12: #{tpu_custom_call.1} parent=1 // pred_region
      %s53 = ssub.s32 512, 512
      %54 = vsyncadd [#allocation4], %s53
      %s55 = sshll.u32 [#allocation5], 4
      %s56 = int_to_ptr.vmem [resolvable:$true] %s55
      %61 = dma.vmem_to_hbm [thread:$0]  %s56, 512, %s1, [#allocation4], 128, 128, 8
    $region13: #{tpu_custom_call.1} parent=1 // pred_fallthru
      _
    // Predicated region
    $region14: #{tpu_custom_call.1} parent=1 // pred_check
      _
    $region15: #{tpu_custom_call.1} parent=1 // pred_check_branch
      %63 = sbr.rel (0) target = $region17
    $region16: #{tpu_custom_call.1} parent=1 // pred_region
      %64 = dma.done [#allocation4], 512
    $region17: #{tpu_custom_call.1} parent=1 // pred_fallthru
      _
    %65 = vsyncpa [#allocation3], 1
    %66 = vsyncpa [#allocation4], 1

</llo_original>
